<compile_context>
chip_gen: v6e
topology: v6e:2x2x1
jax: 0.10.0
libtpu: 0.0.40
codegen_flags: <defaults>
</compile_context>

<pallas_src>
import functools

import numpy as np
import jax
import jax.numpy as jnp
from jax.experimental import pallas as pl
from jax.experimental.pallas import tpu as pltpu


_HALF_PI = float(np.pi / 2.0)


def _make_freqs(max_logscale, n_freqs, logscale=True):
    if logscale:
        freqs = 2.0 ** np.linspace(0.0, float(max_logscale), n_freqs)
    else:
        freqs = np.linspace(1.0, 2.0 ** float(max_logscale), n_freqs)
    return tuple(float(f) for f in freqs)


def _pos_embedding_kernel(x_ref, o_ref, *, freqs):
    # x_ref: (3, tile_b) VMEM tile (batch on the 128-lane axis).
    # o_ref: (3 + 6*n_freqs, tile_b) VMEM tile, same lane-dense layout.
    out_dtype = o_ref.dtype

    # Compute in f32 even if the input arrives as bf16: high-frequency
    # arguments lose mantissa bits before sin otherwise.
    x = x_ref[...].astype(jnp.float32)                      # (3, tile_b)

    # Build the frequency-scaled argument block already in output row order:
    #   [f0*x, f0*x + pi/2, f1*x, f1*x + pi/2, ...]
    # All scale/phase constants are Python scalars -> nothing is captured.
    # sin(t + pi/2) == cos(t), so one dense EUP sin covers both halves.
    parts = []
    for f in freqs:
        xf = float(f) * x
        parts.append(xf)                                    # -> sin rows
        parts.append(xf + _HALF_PI)                         # -> cos rows
    args = jnp.concatenate(parts, axis=0)                   # (6*n_freqs, tile_b)
    emb = jnp.sin(args)                                     # single dense EUP call

    # One full-block, fully aligned, lane-dense store (no 3-row masked stores).
    out_block = jnp.concatenate([x, emb], axis=0)           # (out_dim, tile_b)
    o_ref[...] = out_block.astype(out_dtype)


def pos_embedding_lane_major(x, max_logscale, n_freqs, logscale=True, *,
                             tile_b=8192):
    """x: (B, 3) -> lane-dense (3 + 6*n_freqs, B) slab (batch on lanes).

    This is the transpose-free fast path; consumers that can contract the
    lane-major slab directly (e.g. the first NeRF MLP matmul via dot_general
    or pre-permuted weights) should use this instead of `pos_embedding`.
    """
    B, C = x.shape
    assert C == 3, "PosEmbedding expects x of shape (B, 3)"

    freqs = _make_freqs(max_logscale, n_freqs, logscale)
    out_dim = C + 2 * C * n_freqs

    # Tile width: multiple of 128 lanes.
    tile_b = max(128, (int(tile_b) // 128) * 128)
    b128 = ((B + 127) // 128) * 128
    if b128 >= 256:
        # Guarantee >= 2 grid steps when the batch allows (v7x has 2 TCs).
        half = max(128, ((b128 // 2) // 128) * 128)
        tile_b = min(tile_b, half)
    else:
        tile_b = min(tile_b, b128)
    b_pad = ((B + tile_b - 1) // tile_b) * tile_b

    # Lane-dense presentation: batch on the lane axis (padded lanes compute
    # sin(0)/sin(pi/2) and are sliced off below — intentional and harmless).
    x_t = jnp.pad(x.T, ((0, 0), (0, b_pad - B)))            # (3, b_pad)

    kernel = functools.partial(_pos_embedding_kernel, freqs=freqs)

    itemsize = jnp.dtype(x.dtype).itemsize
    cost = pl.CostEstimate(
        flops=2 * 3 * n_freqs * b_pad,                      # mul + add per row
        transcendentals=6 * n_freqs * b_pad,                # one sin per emb elem
        bytes_accessed=(C + out_dim) * b_pad * itemsize,
    )

    out_t = pl.pallas_call(
        kernel,
        out_shape=jax.ShapeDtypeStruct((out_dim, b_pad), x.dtype),
        grid_spec=pl.GridSpec(
            grid=(b_pad // tile_b,),
            in_specs=[pl.BlockSpec((C, tile_b), lambda i: (0, i))],
            out_specs=pl.BlockSpec((out_dim, tile_b), lambda i: (0, i)),
        ),
        compiler_params=pltpu.CompilerParams(
            dimension_semantics=("parallel",),
            vmem_limit_bytes=32 * 1024 * 1024,
        ),
        cost_estimate=cost,
    )(x_t)

    return out_t[:, :B]


def pos_embedding(x, max_logscale, n_freqs, logscale=True, *, tile_b=8192):
    """Matches PyTorch PosEmbedding.forward: (B, 3) -> (B, 3 + 6*n_freqs).

    NOTE: the batch-major result requires transposing the lane-major slab,
    which costs an extra HBM read+write of the whole output.  Production
    consumers should contract `pos_embedding_lane_major` output directly.
    """
    return pos_embedding_lane_major(
        x, max_logscale, n_freqs, logscale, tile_b=tile_b).T


def pos_embedding_ref(x, max_logscale, n_freqs, logscale=True):
    """Plain-JAX reference matching the PyTorch forward."""
    freqs = _make_freqs(max_logscale, n_freqs, logscale)
    out = [x]
    for f in freqs:
        out.append(jnp.sin(f * x))
        out.append(jnp.cos(f * x))
    return jnp.concatenate(out, axis=-1)


if __name__ == "__main__":
    max_logscale, n_freqs = 3, 4  # out width = 3 + 6*4 = 27

    # Small test: B=16 (exercises padding up to one 128-wide tile).
    x_small = jax.random.normal(jax.random.PRNGKey(0), (16, 3), dtype=jnp.float32)
    out_small = jax.block_until_ready(
        pos_embedding(x_small, max_logscale, n_freqs, logscale=True))
    ref_small = pos_embedding_ref(x_small, max_logscale, n_freqs, logscale=True)
    np.testing.assert_allclose(np.asarray(out_small), np.asarray(ref_small),
                               rtol=1e-5, atol=1e-5)
    assert out_small.shape == (16, 3 + 6 * n_freqs)

    # Non-multiple batch + multi-tile grid (B=385, tile_b=256 -> 2 grid steps),
    # linear (non-log) frequency spacing.
    x_odd = jax.random.normal(jax.random.PRNGKey(1), (385, 3), dtype=jnp.float32)
    out_odd = jax.block_until_ready(
        pos_embedding(x_odd, max_logscale, n_freqs, logscale=False, tile_b=256))
    ref_odd = pos_embedding_ref(x_odd, max_logscale, n_freqs, logscale=False)
    np.testing.assert_allclose(np.asarray(out_odd), np.asarray(ref_odd),
                               rtol=1e-5, atol=1e-5)
    assert out_odd.shape == (385, 3 + 6 * n_freqs)

    # Transpose-free lane-major fast path.
    out_lm = jax.block_until_ready(
        pos_embedding_lane_major(x_odd, max_logscale, n_freqs, logscale=False,
                                 tile_b=256))
    np.testing.assert_allclose(np.asarray(out_lm), np.asarray(ref_odd).T,
                               rtol=1e-5, atol=1e-5)
    assert out_lm.shape == (3 + 6 * n_freqs, 385)

    print("KERNEL_OK")
</pallas_src>

<mosaic_0001>
module attributes {stable_mosaic.version = 11 : i64} {
  func.func @_pos_embedding_kernel(%arg0: i32, %arg1: memref<3x128xf32, #tpu.memory_space<vmem>>, %arg2: memref<27x128xf32, #tpu.memory_space<vmem>>) attributes {dimension_semantics = [#tpu.dimension_semantics<parallel>], iteration_bounds = array<i64: 1>, scalar_prefetch = 0 : i64, scratch_operands = 0 : i64, tpu.core_type = #tpu.core_type<tc>, window_params = [{transform_indices = @transform_0, window_bounds = array<i64: 3, 128>}, {transform_indices = @transform_1, window_bounds = array<i64: 27, 128>}]} {
    %c0 = arith.constant 0 : index
    %c0_0 = arith.constant 0 : index
    %0 = vector.load %arg1[%c0, %c0_0] : memref<3x128xf32, #tpu.memory_space<vmem>>, vector<3x128xf32>
    %cst = arith.constant 1.000000e+00 : f32
    %1 = vector.broadcast %cst : f32 to vector<3x128xf32>
    %2 = arith.mulf %1, %0 : vector<3x128xf32>
    %cst_1 = arith.constant 1.57079637 : f32
    %3 = vector.broadcast %cst_1 : f32 to vector<3x128xf32>
    %4 = arith.addf %2, %3 : vector<3x128xf32>
    %cst_2 = arith.constant 2.000000e+00 : f32
    %5 = vector.broadcast %cst_2 : f32 to vector<3x128xf32>
    %6 = arith.mulf %5, %0 : vector<3x128xf32>
    %cst_3 = arith.constant 1.57079637 : f32
    %7 = vector.broadcast %cst_3 : f32 to vector<3x128xf32>
    %8 = arith.addf %6, %7 : vector<3x128xf32>
    %cst_4 = arith.constant 4.000000e+00 : f32
    %9 = vector.broadcast %cst_4 : f32 to vector<3x128xf32>
    %10 = arith.mulf %9, %0 : vector<3x128xf32>
    %cst_5 = arith.constant 1.57079637 : f32
    %11 = vector.broadcast %cst_5 : f32 to vector<3x128xf32>
    %12 = arith.addf %10, %11 : vector<3x128xf32>
    %cst_6 = arith.constant 8.000000e+00 : f32
    %13 = vector.broadcast %cst_6 : f32 to vector<3x128xf32>
    %14 = arith.mulf %13, %0 : vector<3x128xf32>
    %cst_7 = arith.constant 1.57079637 : f32
    %15 = vector.broadcast %cst_7 : f32 to vector<3x128xf32>
    %16 = arith.addf %14, %15 : vector<3x128xf32>
    %17 = tpu.concatenate %2, %4, %6, %8, %10, %12, %14, %16 in 0 : vector<3x128xf32>, vector<3x128xf32>, vector<3x128xf32>, vector<3x128xf32>, vector<3x128xf32>, vector<3x128xf32>, vector<3x128xf32>, vector<3x128xf32> -> vector<24x128xf32>
    %18 = math.sin %17 : vector<24x128xf32>
    %19 = tpu.concatenate %0, %18 in 0 : vector<3x128xf32>, vector<24x128xf32> -> vector<27x128xf32>
    %c0_8 = arith.constant 0 : index
    %c0_9 = arith.constant 0 : index
    %20 = vector.load %arg2[%c0_8, %c0_9] : memref<27x128xf32, #tpu.memory_space<vmem>>, vector<27x128xf32>
    tpu.vector_store %arg2[%c0_8, %c0_9], %19 {strides = array<i32>} : memref<27x128xf32, #tpu.memory_space<vmem>>, vector<27x128xf32>,
    return
  }
  func.func @transform_0(%arg0: i32) -> (i32, i32) {
    %c0_i32 = arith.constant 0 : i32
    %c0_i32_0 = arith.constant 0 : i32
    return %c0_i32, %arg0 : i32, i32
  }
  func.func @transform_1(%arg0: i32) -> (i32, i32) {
    %c0_i32 = arith.constant 0 : i32
    %c0_i32_0 = arith.constant 0 : i32
    return %c0_i32, %arg0 : i32, i32
  }
}

</mosaic_0001>

<llo_original>
// kernel: tpu_custom_call.1
$region0: #{tpu_custom_call.1}
  #allocation0 [shape = 'u32[]', space=smem, size = 0x4, offset = 0x4, fixed_abs, tag = 'smem constant byte address 0x4 - core index']
  #allocation1 [shape = 'u32[144,128]{1,0:T(1,128)}', space=vmem, size = 0x12000, scoped, tag = 'internal scratch']
  %s0 = inlined_call_operand.hbm [shape: f32[3,128], index: 0, kind: input, shape index: {}]
  %s1 = inlined_call_operand.hbm [shape: f32[27,128], index: 1, kind: output, shape index: {}]
  %s2 = sld [smem:[#allocation0]]
  $region18: #{tpu_custom_call.1} parent=0
    _
  %s4 = ssub.s32 1, %s2
  %s5 = scalar_select 0, %s4, %s2
  $region1: #{tpu_custom_call.1} parent=0
    #allocation2 [shape = 'u8[2048]{0}', space=vmem, size = 0x800, scoped, tag = 'input window, operand 0, single buffered']
    #allocation3 [shape = 's32[1]{0}', space=sflag, size = 0x4, scoped, tag = 'scoped memory for tpu_custom_call.1']
    #allocation4 [shape = 's32[1]{0}', space=sflag, size = 0x4, scoped, tag = 'scoped memory for tpu_custom_call.1']
    #allocation5 [shape = 'u8[16384]{0}', space=vmem, size = 0x4000, scoped, tag = 'output window, operand 0, single buffered']
    %6 = vsyncpa [#allocation3], 0
    %7 = vsyncpa [#allocation4], 0
    // Predicated region
    $region2: #{tpu_custom_call.1} parent=1 // pred_check
      _
    $region3: #{tpu_custom_call.1} parent=1 // pred_check_branch
      %9 = sbr.rel (0) target = $region5
    $region4: #{tpu_custom_call.1} parent=1 // pred_region
      %s11 = ssub.s32 64, 64
      %12 = vsyncadd [#allocation3], %s11
      %s14 = sshll.u32 [#allocation2], 4
      %s15 = int_to_ptr.vmem [resolvable:$true] %s14
      %17 = dma.hbm_to_vmem [thread:$0]  %s0, 64, %s15, [#allocation3]
    $region5: #{tpu_custom_call.1} parent=1 // pred_fallthru
      _
    // Predicated region
    $region6: #{tpu_custom_call.1} parent=1 // pred_check
      _
    $region7: #{tpu_custom_call.1} parent=1 // pred_check_branch
      %19 = sbr.rel (0) target = $region9
    $region8: #{tpu_custom_call.1} parent=1 // pred_region
      %20 = dma.done [#allocation3], 64
    $region9: #{tpu_custom_call.1} parent=1 // pred_fallthru
      _
    %v21 = vld [vmem:[#allocation2] sm:$0x7]
    %v22 = vadd.f32 %v21, 1.5707964
    %v23 = vmul.f32 %v21, 2.0
    %v24 = vadd.f32 %v23, 1.5707964
    %v25 = vmul.f32 %v21, 4.0
    %v26 = vadd.f32 %v25, 1.5707964
    %v27 = vmul.f32 %v21, 8.0
    %v28 = vadd.f32 %v27, 1.5707964
    %v30 = vrot.slane %v22, 5
    %v33 = vrot.slane %v23, 2
    %v36 = vrot.slane %v24, 7
    %v39 = vrot.slane %v25, 4
    %v42 = vrot.slane %v26, 1
    %v45 = vrot.slane %v27, 6
    %v48 = vrot.slane %v28, 3
    %vm50 = vcmask 1042432
    %v51 = vsel %vm50, %v21, %v30
    %vm52 = vcmask 1045504
    %v53 = vsel %vm52, %v51, %v33
    %vm54 = vcmask 1040384
    %v55 = vsel %vm54, %v33, %v36
    %vm56 = vcmask 1043456
    %v57 = vsel %vm56, %v55, %v39
    %vm58 = vcmask 1046528
    %v59 = vsel %vm58, %v57, %v42
    %vm60 = vcmask 1041408
    %v61 = vsel %vm60, %v42, %v45
    %vm62 = vcmask 1044480
    %v63 = vsel %vm62, %v61, %v48
    %v64 = vand.u32 2147483647, %v53
    %vm65 = vcmp.le.f32.partialorder %v64, 0.7853982
    %vm66 = vcmp.lt.s32.totalorder %v53, 0
    %v67 = vand.u32 %v53, 2139095040
    %v68 = vshrl.u32 %v67, 23
    %v69 = vsub.s32 %v68, 127
    %v70 = vand.u32 2147483647, %v53
    %v71 = vand.u32 %v70, 8388607
    %v72 = vor.u32 %v71, 8388608
    %v73 = vsub.s32 0, %v72
    %v74 = vadd.s32 %v69, 1
    %vm75 = vcmp.gt.s32.totalorder %v74, 0
    %v76 = vsel %vm75, %v74, 0
    %v77 = vshrl.u32 %v76, 5
    %v78 = vand.u32 %v76, 31
    %v79 = vsub.s32 32, %v78
    %v80 = vshrl.u32 683565275, %v79
    %v81 = vshll.u32 683565275, %v78
    %v82 = vshrl.u32 2475754826, %v79
    %v83 = vor.u32 %v81, %v82
    %v84 = vshll.u32 2475754826, %v78
    %v85 = vshrl.u32 2131351028, %v79
    %v86 = vor.u32 %v84, %v85
    %v87 = vshll.u32 2131351028, %v78
    %v88 = vshrl.u32 2102212464, %v79
    %v89 = vor.u32 %v87, %v88
    %v90 = vshll.u32 2102212464, %v78
    %v91 = vshrl.u32 920167782, %v79
    %v92 = vor.u32 %v90, %v91
    %v93 = vshll.u32 920167782, %v78
    %v94 = vshrl.u32 1326507024, %v79
    %v95 = vor.u32 %v93, %v94
    %vm96 = vcmp.lt.s32.totalorder %v77, 1
    %vm97 = vcmp.lt.s32.totalorder %v77, 2
    %vm98 = vcmp.lt.s32.totalorder %v77, 3
    %vm99 = vcmp.lt.s32.totalorder %v77, 4
    %v100 = vsel %vm96, %v80, %v83
    %v101 = vsel %vm99, %v89, 2102212464
    %v102 = vsel %vm98, %v86, %v101
    %v103 = vsel %vm97, %v100, %v102
    %v104 = vsel %vm96, %v83, %v86
    %v105 = vsel %vm99, %v92, 920167782
    %v106 = vsel %vm98, %v89, %v105
    %v107 = vsel %vm97, %v104, %v106
    %v108 = vsel %vm96, %v86, %v89
    %v109 = vsel %vm99, %v95, 1326507024
    %v110 = vsel %vm98, %v92, %v109
    %v111 = vsel %vm97, %v108, %v110
    %v112 = vshll.u32 %v72, 8
    %v113 = vmul.u32.u64.compose %v112, %v111
    %v114 = vextract.low.u32 %v113
    %v115 = vextract.high.u32 %v113
    %v116 = vmul.u32.u64.compose %v112, %v107
    %v117 = vextract.low.u32 %v116
    %v118 = vextract.high.u32 %v116
    %v119 = vmul.u32 %v112, %v103
    %v120 = vadd.s32 %v115, %v117
    %vm121 = vc.u32 %v115, %v117
    %v122 = vadd.s32 %v118, 1
    %v123 = vsel %vm121, %v122, %v118
    %v124 = vadd.s32 %v119, %v123
    %v125 = vadd.s32 %v124, 536870912
    %v126 = vshrl.u32 %v125, 30
    %v127 = vshll.u32 %v126, 30
    %v128 = vsub.s32 %v124, %v127
    %vm129 = vcmp.lt.s32.totalorder %v128, 0
    %v130 = vsub.s32 0, %v128
    %v131 = vsel %vm129, %v130, %v128
    %v132 = vclz %v131
    %v133 = vsub.s32 %v132, 2
    %vm134 = vcmp.gt.s32.totalorder 0, %v133
    %v135 = vsel %vm134, 0, %v133
    %v136 = vsub.s32 32, %v135
    %v137 = vshll.u32 %v128, %v135
    %v138 = vshrl.u32 %v120, %v136
    %v139 = vor.u32 %v137, %v138
    %v140 = vsub.s32 4294967266, %v135
    %v141 = vadd.s32 %v140, 127
    %v142 = vshll.u32 %v141, 23
    %v143 = vor.u32 4788187, %v142
    %v144 = vand.u32 2147483647, %v143
    %v146 = vcvt.s32.f32 %v139
    %v147 = vmul.f32 %v146, %v144
    %v148 = vxor.u32 %v147, 2147483648
    %v149 = vsel %vm66, %v148, %v147
    %v150 = vsub.s32 4, %v126
    %v151 = vsel %vm66, %v150, %v126
    %v152 = vsel %vm65, %v53, %v149
    %v153 = vsel %vm65, 0, %v151
    %v154 = vcosq.f32.pop %v152
    %v155 = vsinq.f32.pop %v152
    %vm156 = vweird.f32 %v53
    %v157 = vadd.s32 %v153, 3
    %v158 = vand.u32 %v157, 3
    %vm159 = vcmp.lt.s32.totalorder %v158, 2
    %vm160 = vcmp.eq.s32.totalorder %v158, 0
    %v161 = vxor.u32 %v155, 2147483648
    %v162 = vsel %vm160, %v154, %v161
    %vm163 = vcmp.eq.s32.totalorder %v158, 2
    %v164 = vxor.u32 %v154, 2147483648
    %v165 = vsel %vm163, %v164, %v155
    %v166 = vsel %vm159, %v162, %v165
    %v167 = vsel %vm156, nan, %v166
    %v168 = vand.u32 2147483647, %v59
    %vm169 = vcmp.le.f32.partialorder %v168, 0.7853982
    %vm170 = vcmp.lt.s32.totalorder %v59, 0
    %v171 = vand.u32 %v59, 2139095040
    %v172 = vshrl.u32 %v171, 23
    %v173 = vsub.s32 %v172, 127
    %v174 = vand.u32 2147483647, %v59
    %v175 = vand.u32 %v174, 8388607
    %v176 = vor.u32 %v175, 8388608
    %v177 = vsub.s32 0, %v176
    %v178 = vadd.s32 %v173, 1
    %vm179 = vcmp.gt.s32.totalorder %v178, 0
    %v180 = vsel %vm179, %v178, 0
    %v181 = vshrl.u32 %v180, 5
    %v182 = vand.u32 %v180, 31
    %v183 = vsub.s32 32, %v182
    %v184 = vshrl.u32 683565275, %v183
    %v185 = vshll.u32 683565275, %v182
    %v186 = vshrl.u32 2475754826, %v183
    %v187 = vor.u32 %v185, %v186
    %v188 = vshll.u32 2475754826, %v182
    %v189 = vshrl.u32 2131351028, %v183
    %v190 = vor.u32 %v188, %v189
    %v191 = vshll.u32 2131351028, %v182
    %v192 = vshrl.u32 2102212464, %v183
    %v193 = vor.u32 %v191, %v192
    %v194 = vshll.u32 2102212464, %v182
    %v195 = vshrl.u32 920167782, %v183
    %v196 = vor.u32 %v194, %v195
    %v197 = vshll.u32 920167782, %v182
    %v198 = vshrl.u32 1326507024, %v183
    %v199 = vor.u32 %v197, %v198
    %vm200 = vcmp.lt.s32.totalorder %v181, 1
    %vm201 = vcmp.lt.s32.totalorder %v181, 2
    %vm202 = vcmp.lt.s32.totalorder %v181, 3
    %vm203 = vcmp.lt.s32.totalorder %v181, 4
    %v204 = vsel %vm200, %v184, %v187
    %v205 = vsel %vm203, %v193, 2102212464
    %v206 = vsel %vm202, %v190, %v205
    %v207 = vsel %vm201, %v204, %v206
    %v208 = vsel %vm200, %v187, %v190
    %v209 = vsel %vm203, %v196, 920167782
    %v210 = vsel %vm202, %v193, %v209
    %v211 = vsel %vm201, %v208, %v210
    %v212 = vsel %vm200, %v190, %v193
    %v213 = vsel %vm203, %v199, 1326507024
    %v214 = vsel %vm202, %v196, %v213
    %v215 = vsel %vm201, %v212, %v214
    %v216 = vshll.u32 %v176, 8
    %v217 = vmul.u32.u64.compose %v216, %v215
    %v218 = vextract.low.u32 %v217
    %v219 = vextract.high.u32 %v217
    %v220 = vmul.u32.u64.compose %v216, %v211
    %v221 = vextract.low.u32 %v220
    %v222 = vextract.high.u32 %v220
    %v223 = vmul.u32 %v216, %v207
    %v224 = vadd.s32 %v219, %v221
    %vm225 = vc.u32 %v219, %v221
    %v226 = vadd.s32 %v222, 1
    %v227 = vsel %vm225, %v226, %v222
    %v228 = vadd.s32 %v223, %v227
    %v229 = vadd.s32 %v228, 536870912
    %v230 = vshrl.u32 %v229, 30
    %v231 = vshll.u32 %v230, 30
    %v232 = vsub.s32 %v228, %v231
    %vm233 = vcmp.lt.s32.totalorder %v232, 0
    %v234 = vsub.s32 0, %v232
    %v235 = vsel %vm233, %v234, %v232
    %v236 = vclz %v235
    %v237 = vsub.s32 %v236, 2
    %vm238 = vcmp.gt.s32.totalorder 0, %v237
    %v239 = vsel %vm238, 0, %v237
    %v240 = vsub.s32 32, %v239
    %v241 = vshll.u32 %v232, %v239
    %v242 = vshrl.u32 %v224, %v240
    %v243 = vor.u32 %v241, %v242
    %v244 = vsub.s32 4294967266, %v239
    %v245 = vadd.s32 %v244, 127
    %v246 = vshll.u32 %v245, 23
    %v247 = vor.u32 4788187, %v246
    %v248 = vand.u32 2147483647, %v247
    %v250 = vcvt.s32.f32 %v243
    %v251 = vmul.f32 %v250, %v248
    %v252 = vxor.u32 %v251, 2147483648
    %v253 = vsel %vm170, %v252, %v251
    %v254 = vsub.s32 4, %v230
    %v255 = vsel %vm170, %v254, %v230
    %v256 = vsel %vm169, %v59, %v253
    %v257 = vsel %vm169, 0, %v255
    %v258 = vcosq.f32.pop %v256
    %v259 = vsinq.f32.pop %v256
    %vm260 = vweird.f32 %v59
    %v261 = vadd.s32 %v257, 3
    %v262 = vand.u32 %v261, 3
    %vm263 = vcmp.lt.s32.totalorder %v262, 2
    %vm264 = vcmp.eq.s32.totalorder %v262, 0
    %v265 = vxor.u32 %v259, 2147483648
    %v266 = vsel %vm264, %v258, %v265
    %vm267 = vcmp.eq.s32.totalorder %v262, 2
    %v268 = vxor.u32 %v258, 2147483648
    %v269 = vsel %vm267, %v268, %v259
    %v270 = vsel %vm263, %v266, %v269
    %v271 = vsel %vm260, nan, %v270
    %v272 = vand.u32 2147483647, %v63
    %vm273 = vcmp.le.f32.partialorder %v272, 0.7853982
    %vm274 = vcmp.lt.s32.totalorder %v63, 0
    %v275 = vand.u32 %v63, 2139095040
    %v276 = vshrl.u32 %v275, 23
    %v277 = vsub.s32 %v276, 127
    %v278 = vand.u32 2147483647, %v63
    %v279 = vand.u32 %v278, 8388607
    %v280 = vor.u32 %v279, 8388608
    %v281 = vsub.s32 0, %v280
    %v282 = vadd.s32 %v277, 1
    %vm283 = vcmp.gt.s32.totalorder %v282, 0
    %v284 = vsel %vm283, %v282, 0
    %v285 = vshrl.u32 %v284, 5
    %v286 = vand.u32 %v284, 31
    %v287 = vsub.s32 32, %v286
    %v288 = vshrl.u32 683565275, %v287
    %v289 = vshll.u32 683565275, %v286
    %v290 = vshrl.u32 2475754826, %v287
    %v291 = vor.u32 %v289, %v290
    %v292 = vshll.u32 2475754826, %v286
    %v293 = vshrl.u32 2131351028, %v287
    %v294 = vor.u32 %v292, %v293
    %v295 = vshll.u32 2131351028, %v286
    %v296 = vshrl.u32 2102212464, %v287
    %v297 = vor.u32 %v295, %v296
    %v298 = vshll.u32 2102212464, %v286
    %v299 = vshrl.u32 920167782, %v287
    %v300 = vor.u32 %v298, %v299
    %v301 = vshll.u32 920167782, %v286
    %v302 = vshrl.u32 1326507024, %v287
    %v303 = vor.u32 %v301, %v302
    %vm304 = vcmp.lt.s32.totalorder %v285, 1
    %vm305 = vcmp.lt.s32.totalorder %v285, 2
    %vm306 = vcmp.lt.s32.totalorder %v285, 3
    %vm307 = vcmp.lt.s32.totalorder %v285, 4
    %v308 = vsel %vm304, %v288, %v291
    %v309 = vsel %vm307, %v297, 2102212464
    %v310 = vsel %vm306, %v294, %v309
    %v311 = vsel %vm305, %v308, %v310
    %v312 = vsel %vm304, %v291, %v294
    %v313 = vsel %vm307, %v300, 920167782
    %v314 = vsel %vm306, %v297, %v313
    %v315 = vsel %vm305, %v312, %v314
    %v316 = vsel %vm304, %v294, %v297
    %v317 = vsel %vm307, %v303, 1326507024
    %v318 = vsel %vm306, %v300, %v317
    %v319 = vsel %vm305, %v316, %v318
    %v320 = vshll.u32 %v280, 8
    %v321 = vmul.u32.u64.compose %v320, %v319
    %v322 = vextract.low.u32 %v321
    %v323 = vextract.high.u32 %v321
    %v324 = vmul.u32.u64.compose %v320, %v315
    %v325 = vextract.low.u32 %v324
    %v326 = vextract.high.u32 %v324
    %v327 = vmul.u32 %v320, %v311
    %v328 = vadd.s32 %v323, %v325
    %vm329 = vc.u32 %v323, %v325
    %v330 = vadd.s32 %v326, 1
    %v331 = vsel %vm329, %v330, %v326
    %v332 = vadd.s32 %v327, %v331
    %v333 = vadd.s32 %v332, 536870912
    %v334 = vshrl.u32 %v333, 30
    %v335 = vshll.u32 %v334, 30
    %v336 = vsub.s32 %v332, %v335
    %vm337 = vcmp.lt.s32.totalorder %v336, 0
    %v338 = vsub.s32 0, %v336
    %v339 = vsel %vm337, %v338, %v336
    %v340 = vclz %v339
    %v341 = vsub.s32 %v340, 2
    %vm342 = vcmp.gt.s32.totalorder 0, %v341
    %v343 = vsel %vm342, 0, %v341
    %v344 = vsub.s32 32, %v343
    %v345 = vshll.u32 %v336, %v343
    %v346 = vshrl.u32 %v328, %v344
    %v347 = vor.u32 %v345, %v346
    %v348 = vsub.s32 4294967266, %v343
    %v349 = vadd.s32 %v348, 127
    %v350 = vshll.u32 %v349, 23
    %v351 = vor.u32 4788187, %v350
    %v352 = vand.u32 2147483647, %v351
    %v354 = vcvt.s32.f32 %v347
    %v355 = vmul.f32 %v354, %v352
    %v356 = vxor.u32 %v355, 2147483648
    %v357 = vsel %vm274, %v356, %v355
    %v358 = vsub.s32 4, %v334
    %v359 = vsel %vm274, %v358, %v334
    %v360 = vsel %vm273, %v63, %v357
    %v361 = vsel %vm273, 0, %v359
    %v362 = vcosq.f32.pop %v360
    %v363 = vsinq.f32.pop %v360
    %vm364 = vweird.f32 %v63
    %v365 = vadd.s32 %v361, 3
    %v366 = vand.u32 %v365, 3
    %vm367 = vcmp.lt.s32.totalorder %v366, 2
    %vm368 = vcmp.eq.s32.totalorder %v366, 0
    %v369 = vxor.u32 %v363, 2147483648
    %v370 = vsel %vm368, %v362, %v369
    %vm371 = vcmp.eq.s32.totalorder %v366, 2
    %v372 = vxor.u32 %v362, 2147483648
    %v373 = vsel %vm371, %v372, %v363
    %v374 = vsel %vm367, %v370, %v373
    %v375 = vsel %vm364, nan, %v374
    %v379 = vrot.slane %v167, 5
    %v380 = vrot.slane %v271, 5
    %v381 = vsel %vm50, %v379, %v380
    %v382 = vrot.slane %v375, 5
    %v383 = vsel %vm50, %v380, %v382
    %v388 = vsel %vm50, %v21, %v379
    %389 = vst [vmem:[#allocation5] sm:$0xff] %v388
    %390 = vst [vmem:[#allocation5 + $0x8] sm:$0xff] %v381
    %391 = vst [vmem:[#allocation5 + $0x10] sm:$0xff] %v383
    %392 = vst [vmem:[#allocation5 + $0x18] sm:$0x7] %v382
    // Predicated region
    $region10: #{tpu_custom_call.1} parent=1 // pred_check
      _
    $region11: #{tpu_custom_call.1} parent=1 // pred_check_branch
      %394 = sbr.rel (0) target = $region13
    $region12: #{tpu_custom_call.1} parent=1 // pred_region
      %s396 = ssub.s32 512, 512
      %397 = vsyncadd [#allocation4], %s396
      %s398 = sshll.u32 [#allocation5], 4
      %s399 = int_to_ptr.vmem [resolvable:$true] %s398
      %404 = dma.vmem_to_hbm [thread:$0]  %s399, 512, %s1, [#allocation4], 128, 128, 8
    $region13: #{tpu_custom_call.1} parent=1 // pred_fallthru
      _
    // Predicated region
    $region14: #{tpu_custom_call.1} parent=1 // pred_check
      _
    $region15: #{tpu_custom_call.1} parent=1 // pred_check_branch
      %406 = sbr.rel (0) target = $region17
    $region16: #{tpu_custom_call.1} parent=1 // pred_region
      %407 = dma.done [#allocation4], 512
    $region17: #{tpu_custom_call.1} parent=1 // pred_fallthru
      _
    %408 = vsyncpa [#allocation3], 1
    %409 = vsyncpa [#allocation4], 1

</llo_original>
